<compile_context>
chip_gen: v5e
topology: v5e:2x2
jax: 0.10.0
libtpu: 0.0.40
codegen_flags: <defaults>
</compile_context>

<pallas_src>
import jax
import jax.numpy as jnp
from jax.experimental import pallas as pl
from jax.experimental.pallas import tpu as pltpu

LANE = 128


def _round_up(x, m):
    return ((x + m - 1) // m) * m


def _default_tiles(n_pad):
    """Row / reduction tiles for the tiled aggregation path.

    Big tiles amortize the ~0.35us per-grid-step overhead (measured 29% -> 85% of HBM
    roofline going 128 -> 512 tiles); keep at least 2 row tiles when possible so the
    'parallel' row axis can feed both v7x TensorCores.
    """
    def largest_divisor(cap):
        t = LANE
        while t * 2 <= cap and n_pad % (t * 2) == 0:
            t *= 2
        return t

    tile_m = largest_divisor(min(512, max(LANE, n_pad // 2)))
    tile_k = largest_divisor(1024)
    return tile_m, tile_k


def _vmem_limit(block_bytes):
    # estimated pipelined-block footprint + headroom, capped well below v7x's 64 MiB
    # physical per-core VMEM.
    return int(min(48 * 1024 * 1024, block_bytes + (8 << 20)))


# --------------------------------------------------------------------------------------
# Kernels
# --------------------------------------------------------------------------------------
def _mlp_message_kernel(feat_ref, w1_ref, b1_ref, w2g_ref, b2g_ref, xw_ref):
    """Per row tile: xw = leaky_relu(feat @ W1 + b1) @ (W2 @ Wg) + b2 @ Wg."""
    h1 = jnp.dot(feat_ref[...], w1_ref[...],
                 preferred_element_type=jnp.float32) + b1_ref[...]        # [TM, 4L_pad] f32
    h1 = jnp.where(h1 > 0, h1, 0.01 * h1)                                 # leaky_relu (f32 VPU)
    xw = jnp.dot(h1.astype(jnp.bfloat16), w2g_ref[...],
                 preferred_element_type=jnp.float32) + b2g_ref[...]       # [TM, L_pad] f32
    xw_ref[...] = xw.astype(xw_ref.dtype)


def _aggregate_kernel(adj_ref, xw_ref, bg_ref, out_ref):
    """out[row tile] = sum_k A[row tile, col tile k] @ xw[col tile k] + bg.

    Accumulates directly into the f32 output block (same block index across the
    'arbitrary' k axis => VMEM-resident, no scratch).  xw is the full VMEM-resident
    array; the current k slab is sliced in-kernel.
    """
    k = pl.program_id(1)
    tile_k = adj_ref.shape[1]

    @pl.when(k == 0)
    def _init():
        out_ref[...] = jnp.zeros_like(out_ref)

    col0 = pl.multiple_of(k * tile_k, tile_k)
    # int8 edge counts -> bf16 MXU feed (two-step cast via f32; hides under the adj DMA).
    adj_bf16 = adj_ref[...].astype(jnp.float32).astype(jnp.bfloat16)
    out_ref[...] += jnp.dot(adj_bf16, xw_ref[pl.ds(col0, tile_k), :],
                            preferred_element_type=jnp.float32)

    @pl.when(k == pl.num_programs(1) - 1)
    def _finalize():
        out_ref[...] += bg_ref[...]


def _fused_small_kernel(feat_ref, w1_ref, b1_ref, w2g_ref, b2g_ref, adj_ref, bg_ref,
                        out_ref):
    """Tiny-graph path: whole problem VMEM-resident, single invocation, no xw HBM trip."""
    h1 = jnp.dot(feat_ref[...], w1_ref[...],
                 preferred_element_type=jnp.float32) + b1_ref[...]
    h1 = jnp.where(h1 > 0, h1, 0.01 * h1)
    xw = jnp.dot(h1.astype(jnp.bfloat16), w2g_ref[...],
                 preferred_element_type=jnp.float32) + b2g_ref[...]
    adj_bf16 = adj_ref[...].astype(jnp.float32).astype(jnp.bfloat16)
    out_ref[...] = jnp.dot(adj_bf16, xw.astype(jnp.bfloat16),
                           preferred_element_type=jnp.float32) + bg_ref[...]


# --------------------------------------------------------------------------------------
# Parameter / input preparation (glue, run once for a static model / graph)
# --------------------------------------------------------------------------------------
def init_params(key, dim_feat, dim_latent):
    """nn.Linear-style init: uniform(+-1/sqrt(fan_in)) for W and b."""
    ks = jax.random.split(key, 6)

    def lin(kw, kb, fan_in, fan_out):
        bound = 1.0 / jnp.sqrt(jnp.float32(fan_in))
        w = jax.random.uniform(kw, (fan_in, fan_out), jnp.float32, -bound, bound)
        b = jax.random.uniform(kb, (1, fan_out), jnp.float32, -bound, bound)
        return w, b

    w1, b1 = lin(ks[0], ks[1], dim_feat, 4 * dim_latent)        # self.MLP
    w2, b2 = lin(ks[2], ks[3], 4 * dim_latent, dim_latent)      # self.MLP_1
    wg, bg = lin(ks[4], ks[5], dim_latent, dim_latent)          # conv_embed_1 linear
    return dict(w1=w1, b1=b1, w2=w2, b2=b2, wg=wg, bg=bg)


def prepare_params(params, dim_feat, dim_latent):
    """Fold the conv message linear into MLP_1 ((h@W2+b2)@Wg == h@(W2@Wg) + b2@Wg) in f32,
    then zero-pad to lane-dense (x128) shapes.  Weights bf16 (MXU feeds), biases f32."""
    f_pad = _round_up(dim_feat, LANE)
    h_pad = _round_up(4 * dim_latent, LANE)
    l_pad = _round_up(dim_latent, LANE)

    w2g = params["w2"] @ params["wg"]      # host-side fold: removes one MXU pass per tile
    b2g = params["b2"] @ params["wg"]

    def pad2(a, rows, cols, dtype):
        return jnp.pad(a, ((0, rows - a.shape[0]), (0, cols - a.shape[1]))).astype(dtype)

    return dict(
        w1=pad2(params["w1"], f_pad, h_pad, jnp.bfloat16),
        b1=pad2(params["b1"], 1, h_pad, jnp.float32),
        w2g=pad2(w2g, h_pad, l_pad, jnp.bfloat16),
        b2g=pad2(b2g, 1, l_pad, jnp.float32),
        bg=pad2(params["bg"], 1, l_pad, jnp.float32),
    )


def build_dense_adjacency(edge_index, n_pad):
    """aggr='add': A[dst, src] = multiplicity of edge src -> dst. Built once (cacheable).

    Stored as int8 counts (halves the dominant HBM read of the memory-bound aggregation);
    counts saturate at 127 duplicate edges per (dst, src) pair.
    """
    src, dst = edge_index[0], edge_index[1]
    counts = jnp.zeros((n_pad, n_pad), jnp.int32).at[dst, src].add(1)
    return jnp.minimum(counts, 127).astype(jnp.int8)


# --------------------------------------------------------------------------------------
# Forward
# --------------------------------------------------------------------------------------
def item_gcn_forward(features, adj_pad, padded_params, dim_latent,
                     *, tile_m=None, tile_k=None, force_tiled=False):
    n, dim_feat = features.shape
    n_pad = adj_pad.shape[0]
    w1, b1 = padded_params["w1"], padded_params["b1"]
    w2g, b2g = padded_params["w2g"], padded_params["b2g"]
    bg = padded_params["bg"]
    f_pad, h4_pad = w1.shape
    l_pad = w2g.shape[1]
    assert n_pad >= n and n_pad % LANE == 0

    feat_pad = jnp.pad(features.astype(jnp.float32),
                       ((0, n_pad - n), (0, f_pad - dim_feat))).astype(jnp.bfloat16)

    # ---- tiny-graph path: one fused kernel, everything VMEM-resident --------------------
    if not force_tiled and n_pad <= 512:
        h = pl.pallas_call(
            _fused_small_kernel,
            out_shape=jax.ShapeDtypeStruct((n_pad, l_pad), jnp.float32),
        )(feat_pad, w1, b1, w2g, b2g, adj_pad, bg)
        return h[:n, :dim_latent]

    # ---- general path ---------------------------------------------------------------------
    if tile_m is None or tile_k is None:
        tile_m, tile_k = _default_tiles(n_pad)
    assert n_pad % tile_m == 0 and n_pad % tile_k == 0, (n_pad, tile_m, tile_k)

    # kernel 1: fused MLP + folded message linear (row-tiled, weights grid-invariant).
    vmem1 = (2 * (tile_m * f_pad * 2 + f_pad * h4_pad * 2 + h4_pad * 4
                  + h4_pad * l_pad * 2 + l_pad * 4 + tile_m * l_pad * 2)
             + tile_m * h4_pad * 4 + tile_m * l_pad * 4)        # f32 temporaries (h1, xw)
    xw = pl.pallas_call(
        _mlp_message_kernel,
        out_shape=jax.ShapeDtypeStruct((n_pad, l_pad), jnp.bfloat16),
        grid=(n_pad // tile_m,),
        in_specs=[
            pl.BlockSpec((tile_m, f_pad), lambda i: (i, 0)),
            pl.BlockSpec((f_pad, h4_pad), lambda i: (0, 0)),
            pl.BlockSpec((1, h4_pad), lambda i: (0, 0)),
            pl.BlockSpec((h4_pad, l_pad), lambda i: (0, 0)),
            pl.BlockSpec((1, l_pad), lambda i: (0, 0)),
        ],
        out_specs=pl.BlockSpec((tile_m, l_pad), lambda i: (i, 0)),
        compiler_params=pltpu.CompilerParams(
            dimension_semantics=("parallel",),
            vmem_limit_bytes=_vmem_limit(vmem1),
        ),
    )(feat_pad, w1, b1, w2g, b2g)

    # kernel 2: tiled A @ xw + bg.  xw is fetched once (constant index map) and stays
    # VMEM-resident; accumulation goes directly into the f32 output block over the
    # 'arbitrary' k axis.
    vmem2 = (2 * (tile_m * tile_k * 1 + n_pad * l_pad * 2 + l_pad * 4 + tile_m * l_pad * 4)
             + tile_m * tile_k * 6)                             # in-kernel f32/bf16 cast temps
    h = pl.pallas_call(
        _aggregate_kernel,
        out_shape=jax.ShapeDtypeStruct((n_pad, l_pad), jnp.float32),
        grid=(n_pad // tile_m, n_pad // tile_k),
        in_specs=[
            pl.BlockSpec((tile_m, tile_k), lambda i, k: (i, k)),
            pl.BlockSpec((n_pad, l_pad), lambda i, k: (0, 0)),   # xw: resident, no re-reads
            pl.BlockSpec((1, l_pad), lambda i, k: (0, 0)),
        ],
        out_specs=pl.BlockSpec((tile_m, l_pad), lambda i, k: (i, 0)),
        compiler_params=pltpu.CompilerParams(
            dimension_semantics=("parallel", "arbitrary"),
            vmem_limit_bytes=_vmem_limit(vmem2),
        ),
    )(adj_pad, xw, bg)

    return h[:n, :dim_latent]


# --------------------------------------------------------------------------------------
# Pure-JAX reference (f32) for validation
# --------------------------------------------------------------------------------------
def reference_forward(edge_index, features, params):
    h1 = features @ params["w1"] + params["b1"]
    h1 = jnp.where(h1 > 0, h1, 0.01 * h1)
    x = h1 @ params["w2"] + params["b2"]
    xw = x @ params["wg"]
    n = features.shape[0]
    adj = jnp.zeros((n, n), jnp.float32).at[edge_index[1], edge_index[0]].add(1.0)
    return adj @ xw + params["bg"]


if __name__ == "__main__":
    DIM_FEAT = 32
    DIM_LATENT = 16

    key = jax.random.PRNGKey(0)
    k_feat1, k_edge1, k_par, k_feat2, k_edge2 = jax.random.split(key, 5)

    params = init_params(k_par, DIM_FEAT, DIM_LATENT)
    padded_params = prepare_params(params, DIM_FEAT, DIM_LATENT)   # one-time, cacheable

    # --- case 1: tiny graph -> fused single-kernel path (no xw HBM round trip) ----------
    N1, E1 = 64, 128
    feats1 = jax.random.normal(k_feat1, (N1, DIM_FEAT), jnp.float32)
    edges1 = jax.random.randint(k_edge1, (2, E1), 0, N1, jnp.int32)
    n_pad1 = _round_up(N1, LANE)
    adj1 = build_dense_adjacency(edges1, n_pad1)                   # one-time for static graph

    h1 = item_gcn_forward(feats1, adj1, padded_params, DIM_LATENT)
    jax.block_until_ready(h1)
    assert h1.shape == (N1, DIM_LATENT), h1.shape
    ref1 = reference_forward(edges1, feats1, params)
    err1 = float(jnp.max(jnp.abs(h1 - ref1)))
    assert err1 < 5e-2, f"fused path: max abs error vs f32 reference too large: {err1}"

    # --- case 2: force the tiled two-kernel path with a (2, 2) aggregation grid so the
    #             accumulate-into-output / pl.when init/finalize logic is exercised. ------
    N2, E2 = 200, 512
    feats2 = jax.random.normal(k_feat2, (N2, DIM_FEAT), jnp.float32)
    edges2 = jax.random.randint(k_edge2, (2, E2), 0, N2, jnp.int32)
    n_pad2 = _round_up(N2, LANE)                                   # 256
    adj2 = build_dense_adjacency(edges2, n_pad2)

    h2 = item_gcn_forward(feats2, adj2, padded_params, DIM_LATENT,
                          tile_m=128, tile_k=128, force_tiled=True)
    jax.block_until_ready(h2)
    assert h2.shape == (N2, DIM_LATENT), h2.shape
    ref2 = reference_forward(edges2, feats2, params)
    err2 = float(jnp.max(jnp.abs(h2 - ref2)))
    assert err2 < 5e-2, f"tiled path: max abs error vs f32 reference too large: {err2}"

    print("KERNEL_OK")
</pallas_src>

<mosaic_0001>
module attributes {stable_mosaic.version = 11 : i64} {
  func.func @_fused_small_kernel(%arg0: memref<128x128xbf16, #tpu.memory_space<vmem>>, %arg1: memref<128x128xbf16, #tpu.memory_space<vmem>>, %arg2: memref<1x128xf32, #tpu.memory_space<vmem>>, %arg3: memref<128x128xbf16, #tpu.memory_space<vmem>>, %arg4: memref<1x128xf32, #tpu.memory_space<vmem>>, %arg5: memref<128x128xi8, #tpu.memory_space<vmem>>, %arg6: memref<1x128xf32, #tpu.memory_space<vmem>>, %arg7: memref<128x128xf32, #tpu.memory_space<vmem>>) attributes {dimension_semantics = [], scalar_prefetch = 0 : i64, scratch_operands = 0 : i64, tpu.core_type = #tpu.core_type<tc>} {
    %c0 = arith.constant 0 : index
    %c0_0 = arith.constant 0 : index
    %0 = vector.load %arg0[%c0, %c0_0] : memref<128x128xbf16, #tpu.memory_space<vmem>>, vector<128x128xbf16>
    %c0_1 = arith.constant 0 : index
    %c0_2 = arith.constant 0 : index
    %1 = vector.load %arg1[%c0_1, %c0_2] : memref<128x128xbf16, #tpu.memory_space<vmem>>, vector<128x128xbf16>
    %cst = arith.constant dense<0.000000e+00> : vector<128x128xf32>
    %2 = tpu.matmul %0, %1, %cst {dimension_numbers = #tpu.dot_dimension_numbers<[1], [0], [0], [1], [0, 0, 1, 1], [], []>} : vector<128x128xbf16>, vector<128x128xbf16>, vector<128x128xf32> -> vector<128x128xf32>
    %c0_3 = arith.constant 0 : index
    %c0_4 = arith.constant 0 : index
    %3 = vector.load %arg2[%c0_3, %c0_4] : memref<1x128xf32, #tpu.memory_space<vmem>>, vector<1x128xf32>
    %4 = vector.broadcast %3 : vector<1x128xf32> to vector<128x128xf32>
    %5 = arith.addf %2, %4 : vector<128x128xf32>
    %cst_5 = arith.constant 0.000000e+00 : f32
    %6 = vector.broadcast %cst_5 : f32 to vector<128x128xf32>
    %7 = arith.cmpf ogt, %5, %6 : vector<128x128xf32>
    %cst_6 = arith.constant 0.00999999977 : f32
    %8 = vector.broadcast %cst_6 : f32 to vector<128x128xf32>
    %9 = arith.mulf %8, %5 : vector<128x128xf32>
    %10 = arith.select %7, %5, %9 : vector<128x128xi1>, vector<128x128xf32>
    %11 = arith.truncf %10 : vector<128x128xf32> to vector<128x128xbf16>
    %c0_7 = arith.constant 0 : index
    %c0_8 = arith.constant 0 : index
    %12 = vector.load %arg3[%c0_7, %c0_8] : memref<128x128xbf16, #tpu.memory_space<vmem>>, vector<128x128xbf16>
    %cst_9 = arith.constant dense<0.000000e+00> : vector<128x128xf32>
    %13 = tpu.matmul %11, %12, %cst_9 {dimension_numbers = #tpu.dot_dimension_numbers<[1], [0], [0], [1], [0, 0, 1, 1], [], []>} : vector<128x128xbf16>, vector<128x128xbf16>, vector<128x128xf32> -> vector<128x128xf32>
    %c0_10 = arith.constant 0 : index
    %c0_11 = arith.constant 0 : index
    %14 = vector.load %arg4[%c0_10, %c0_11] : memref<1x128xf32, #tpu.memory_space<vmem>>, vector<1x128xf32>
    %15 = vector.broadcast %14 : vector<1x128xf32> to vector<128x128xf32>
    %16 = arith.addf %13, %15 : vector<128x128xf32>
    %c0_12 = arith.constant 0 : index
    %c0_13 = arith.constant 0 : index
    %17 = vector.load %arg5[%c0_12, %c0_13] : memref<128x128xi8, #tpu.memory_space<vmem>>, vector<128x128xi8>
    %18 = arith.sitofp %17 : vector<128x128xi8> to vector<128x128xf32>
    %19 = arith.truncf %18 : vector<128x128xf32> to vector<128x128xbf16>
    %20 = arith.truncf %16 : vector<128x128xf32> to vector<128x128xbf16>
    %cst_14 = arith.constant dense<0.000000e+00> : vector<128x128xf32>
    %21 = tpu.matmul %19, %20, %cst_14 {dimension_numbers = #tpu.dot_dimension_numbers<[1], [0], [0], [1], [0, 0, 1, 1], [], []>} : vector<128x128xbf16>, vector<128x128xbf16>, vector<128x128xf32> -> vector<128x128xf32>
    %c0_15 = arith.constant 0 : index
    %c0_16 = arith.constant 0 : index
    %22 = vector.load %arg6[%c0_15, %c0_16] : memref<1x128xf32, #tpu.memory_space<vmem>>, vector<1x128xf32>
    %23 = vector.broadcast %22 : vector<1x128xf32> to vector<128x128xf32>
    %24 = arith.addf %21, %23 : vector<128x128xf32>
    %c0_17 = arith.constant 0 : index
    %c0_18 = arith.constant 0 : index
    %25 = vector.load %arg7[%c0_17, %c0_18] : memref<128x128xf32, #tpu.memory_space<vmem>>, vector<128x128xf32>
    tpu.vector_store %arg7[%c0_17, %c0_18], %24 {strides = array<i32>} : memref<128x128xf32, #tpu.memory_space<vmem>>, vector<128x128xf32>,
    return
  }
}

</mosaic_0001>

<llo_original>
// kernel: tpu_custom_call.1
$region0: #{tpu_custom_call.1}
  #allocation0 [shape = 'u32[]', space=smem, size = 0x4, offset = 0x4, fixed_abs, tag = 'smem constant byte address 0x4 - core index']
  #allocation1 [shape = 'u32[72,128]{1,0:T(1,128)}', space=vmem, size = 0x9000, scoped, tag = 'internal scratch']
  %s0 = inlined_call_operand.hbm [shape: bf16[128,128], index: 0, kind: input, shape index: {}]
  %s1 = inlined_call_operand.hbm [shape: bf16[128,128], index: 1, kind: input, shape index: {}]
  %s2 = inlined_call_operand.vmem [shape: f32[1,128], index: 2, kind: input, shape index: {}]
  %s3 = inlined_call_operand.hbm [shape: bf16[128,128], index: 3, kind: input, shape index: {}]
  %s4 = inlined_call_operand.vmem [shape: f32[1,128], index: 4, kind: input, shape index: {}]
  %s5 = inlined_call_operand.hbm [shape: s8[128,128], index: 5, kind: input, shape index: {}]
  %s6 = inlined_call_operand.vmem [shape: f32[1,128], index: 6, kind: input, shape index: {}]
  %s7 = inlined_call_operand.hbm [shape: f32[128,128], index: 7, kind: output, shape index: {}]
  %s8 = sld [smem:[#allocation0]]
  $region54: #{tpu_custom_call.1} parent=0
    _
  %s10 = ssub.s32 1, %s8
  %s11 = scalar_select 0, %s10, %s8
  $region1: #{tpu_custom_call.1} parent=0
    #allocation2 [shape = 'u8[32768]{0}', space=vmem, size = 0x8000, scoped, tag = 'input window, operand 0, single buffered']
    #allocation3 [shape = 's32[1]{0}', space=sflag, size = 0x4, scoped, tag = 'scoped memory for tpu_custom_call.1']
    #allocation4 [shape = 's32[1]{0}', space=sflag, size = 0x4, scoped, tag = 'scoped memory for tpu_custom_call.1']
    #allocation5 [shape = 'u8[32768]{0}', space=vmem, size = 0x8000, scoped, tag = 'input window, operand 1, single buffered']
    #allocation6 [shape = 's32[1]{0}', space=sflag, size = 0x4, scoped, tag = 'scoped memory for tpu_custom_call.1']
    #allocation7 [shape = 'u8[32768]{0}', space=vmem, size = 0x8000, scoped, tag = 'input window, operand 3, single buffered']
    #allocation8 [shape = 'u8[16384]{0}', space=vmem, size = 0x4000, scoped, tag = 'input window, operand 5, single buffered']
    #allocation9 [shape = 's32[1]{0}', space=sflag, size = 0x4, scoped, tag = 'scoped memory for tpu_custom_call.1']
    #allocation10 [shape = 'u8[65536]{0}', space=vmem, size = 0x10000, scoped, tag = 'output window, operand 0, single buffered']
    %12 = vsyncpa [#allocation3], 0
    %13 = vsyncpa [#allocation6], 0
    %14 = vsyncpa [#allocation9], 0
    %15 = vsyncpa [#allocation4], 0
    // Predicated region
    $region2: #{tpu_custom_call.1} parent=1 // pred_check
      _
    $region3: #{tpu_custom_call.1} parent=1 // pred_check_branch
      %17 = sbr.rel (0) target = $region5
    $region4: #{tpu_custom_call.1} parent=1 // pred_region
      %19 = vsyncadd [#allocation3], 0
      %s20 = sshll.u32 %s0, 4
      %s21 = int_to_ptr.hbm [resolvable:$true] %s20
      %s22 = sshll.u32 [#allocation2], 4
      %s23 = int_to_ptr.vmem [resolvable:$true] %s22
      %28 = dma.hbm_to_vmem [thread:$0]  %s21, 1024, %s23, [#allocation3], 64, 64, 4
    $region5: #{tpu_custom_call.1} parent=1 // pred_fallthru
      _
    // Predicated region
    $region6: #{tpu_custom_call.1} parent=1 // pred_check
      _
    $region7: #{tpu_custom_call.1} parent=1 // pred_check_branch
      %30 = sbr.rel (0) target = $region9
    $region8: #{tpu_custom_call.1} parent=1 // pred_region
      %32 = vsyncadd [#allocation6], 0
      %s33 = sshll.u32 %s1, 4
      %s34 = int_to_ptr.hbm [resolvable:$true] %s33
      %s35 = sshll.u32 [#allocation5], 4
      %s36 = int_to_ptr.vmem [resolvable:$true] %s35
      %41 = dma.hbm_to_vmem [thread:$0]  %s34, 1024, %s36, [#allocation6], 64, 64, 4
    $region9: #{tpu_custom_call.1} parent=1 // pred_fallthru
      _
    // Predicated region
    $region10: #{tpu_custom_call.1} parent=1 // pred_check
      _
    $region11: #{tpu_custom_call.1} parent=1 // pred_check_branch
      %43 = sbr.rel (0) target = $region13
    $region12: #{tpu_custom_call.1} parent=1 // pred_region
      _
    $region13: #{tpu_custom_call.1} parent=1 // pred_fallthru
      _
    // Predicated region
    $region14: #{tpu_custom_call.1} parent=1 // pred_check
      _
    $region15: #{tpu_custom_call.1} parent=1 // pred_check_branch
      %45 = sbr.rel (0) target = $region17
    $region16: #{tpu_custom_call.1} parent=1 // pred_region
      %47 = vsyncadd [#allocation6], 0
      %s48 = sshll.u32 %s3, 4
      %s49 = int_to_ptr.hbm [resolvable:$true] %s48
      %s50 = sshll.u32 [#allocation7], 4
      %s51 = int_to_ptr.vmem [resolvable:$true] %s50
      %56 = dma.hbm_to_vmem [thread:$0]  %s49, 1024, %s51, [#allocation6], 64, 64, 4
    $region17: #{tpu_custom_call.1} parent=1 // pred_fallthru
      _
    // Predicated region
    $region18: #{tpu_custom_call.1} parent=1 // pred_check
      _
    $region19: #{tpu_custom_call.1} parent=1 // pred_check_branch
      %58 = sbr.rel (0) target = $region21
    $region20: #{tpu_custom_call.1} parent=1 // pred_region
      _
    $region21: #{tpu_custom_call.1} parent=1 // pred_fallthru
      _
    // Predicated region
    $region22: #{tpu_custom_call.1} parent=1 // pred_check
      _
    $region23: #{tpu_custom_call.1} parent=1 // pred_check_branch
      %60 = sbr.rel (0) target = $region25
    $region24: #{tpu_custom_call.1} parent=1 // pred_region
      %62 = vsyncadd [#allocation9], 0
      %s63 = sshll.u32 %s5, 4
      %s64 = int_to_ptr.hbm [resolvable:$true] %s63
      %s65 = sshll.u32 [#allocation8], 4
      %s66 = int_to_ptr.vmem [resolvable:$true] %s65
      %71 = dma.hbm_to_vmem [thread:$0]  %s64, 512, %s66, [#allocation9], 128, 128, 8
    $region25: #{tpu_custom_call.1} parent=1 // pred_fallthru
      _
    // Predicated region
    $region26: #{tpu_custom_call.1} parent=1 // pred_check
      _
    $region27: #{tpu_custom_call.1} parent=1 // pred_check_branch
      %73 = sbr.rel (0) target = $region29
    $region28: #{tpu_custom_call.1} parent=1 // pred_region
      _
    $region29: #{tpu_custom_call.1} parent=1 // pred_fallthru
      _
    // Predicated region
    $region30: #{tpu_custom_call.1} parent=1 // pred_check
      _
    $region31: #{tpu_custom_call.1} parent=1 // pred_check_branch
      %75 = sbr.rel (0) target = $region33
    $region32: #{tpu_custom_call.1} parent=1 // pred_region
      %77 = dma.done [#allocation3], 1024
    $region33: #{tpu_custom_call.1} parent=1 // pred_fallthru
      _
    // Predicated region
    $region34: #{tpu_custom_call.1} parent=1 // pred_check
      _
    $region35: #{tpu_custom_call.1} parent=1 // pred_check_branch
      %79 = sbr.rel (0) target = $region37
    $region36: #{tpu_custom_call.1} parent=1 // pred_region
      %81 = dma.done [#allocation6], 1024
    $region37: #{tpu_custom_call.1} parent=1 // pred_fallthru
      _
    // Predicated region
    $region38: #{tpu_custom_call.1} parent=1 // pred_check
      _
    $region39: #{tpu_custom_call.1} parent=1 // pred_check_branch
      %83 = sbr.rel (0) target = $region41
    $region40: #{tpu_custom_call.1} parent=1 // pred_region
      %85 = dma.done [#allocation6], 1024
    $region41: #{tpu_custom_call.1} parent=1 // pred_fallthru
      _
    // Predicated region
    $region42: #{tpu_custom_call.1} parent=1 // pred_check
      _
    $region43: #{tpu_custom_call.1} parent=1 // pred_check_branch
      %87 = sbr.rel (0) target = $region45
    $region44: #{tpu_custom_call.1} parent=1 // pred_region
      %89 = dma.done [#allocation9], 512
    $region45: #{tpu_custom_call.1} parent=1 // pred_fallthru
      _
    %v90 = vld [vmem:[#allocation2] sm:$0xf]
    %v91 = vld [vmem:[#allocation2 + $0x4] sm:$0xf]
    %v92 = vld [vmem:[#allocation2 + $0x8] sm:$0xf]
    %v93 = vld [vmem:[#allocation2 + $0xc] sm:$0xf]
    %v94 = vld [vmem:[#allocation2 + $0x10] sm:$0xf]
    %v95 = vld [vmem:[#allocation2 + $0x14] sm:$0xf]
    %v96 = vld [vmem:[#allocation2 + $0x18] sm:$0xf]
    %v97 = vld [vmem:[#allocation2 + $0x1c] sm:$0xf]
    %v98 = vld [vmem:[#allocation2 + $0x20] sm:$0xf]
    %v99 = vld [vmem:[#allocation2 + $0x24] sm:$0xf]
    %v100 = vld [vmem:[#allocation2 + $0x28] sm:$0xf]
    %v101 = vld [vmem:[#allocation2 + $0x2c] sm:$0xf]
    %v102 = vld [vmem:[#allocation2 + $0x30] sm:$0xf]
    %v103 = vld [vmem:[#allocation2 + $0x34] sm:$0xf]
    %v104 = vld [vmem:[#allocation2 + $0x38] sm:$0xf]
    %v105 = vld [vmem:[#allocation2 + $0x3c] sm:$0xf]
    %v106 = vld [vmem:[#allocation5] sm:$0xf]
    %v107 = vld [vmem:[#allocation5 + $0x4] sm:$0xf]
    %v108 = vld [vmem:[#allocation5 + $0x8] sm:$0xf]
    %v109 = vld [vmem:[#allocation5 + $0xc] sm:$0xf]
    %v110 = vld [vmem:[#allocation5 + $0x10] sm:$0xf]
    %v111 = vld [vmem:[#allocation5 + $0x14] sm:$0xf]
    %v112 = vld [vmem:[#allocation5 + $0x18] sm:$0xf]
    %v113 = vld [vmem:[#allocation5 + $0x1c] sm:$0xf]
    %v114 = vld [vmem:[#allocation5 + $0x20] sm:$0xf]
    %v115 = vld [vmem:[#allocation5 + $0x24] sm:$0xf]
    %v116 = vld [vmem:[#allocation5 + $0x28] sm:$0xf]
    %v117 = vld [vmem:[#allocation5 + $0x2c] sm:$0xf]
    %v118 = vld [vmem:[#allocation5 + $0x30] sm:$0xf]
    %v119 = vld [vmem:[#allocation5 + $0x34] sm:$0xf]
    %v120 = vld [vmem:[#allocation5 + $0x38] sm:$0xf]
    %v121 = vld [vmem:[#allocation5 + $0x3c] sm:$0xf]
    %v122 = vld [vmem:[%s2] sm:$0x1]
    %v124 = vperm.slane %v122, 0
    %v142 = vunpack.c.l.b16 %v90
    %v143 = vunpack.c.l.b16 %v91
    %v144 = vunpack.c.l.b16 %v92
    %v145 = vunpack.c.l.b16 %v93
    %v146 = vunpack.c.l.b16 %v94
    %v147 = vunpack.c.l.b16 %v95
    %v148 = vunpack.c.l.b16 %v96
    %v149 = vunpack.c.l.b16 %v97
    %v150 = vunpack.c.l.b16 %v98
    %v151 = vunpack.c.l.b16 %v99
    %v152 = vunpack.c.l.b16 %v100
    %v153 = vunpack.c.l.b16 %v101
    %v154 = vunpack.c.l.b16 %v102
    %v155 = vunpack.c.l.b16 %v103
    %v156 = vunpack.c.l.b16 %v104
    %v157 = vunpack.c.l.b16 %v105
    %v158 = vpack.c.b16 %v143, %v142
    %v159 = vpack.c.b16 %v145, %v144
    %v160 = vpack.c.b16 %v147, %v146
    %v161 = vpack.c.b16 %v149, %v148
    %v162 = vpack.c.b16 %v151, %v150
    %v163 = vpack.c.b16 %v153, %v152
    %v164 = vpack.c.b16 %v155, %v154
    %v165 = vpack.c.b16 %v157, %v156
    %v190 = vunpack.c.l.b16 %v106
    %v191 = vunpack.c.l.b16 %v107
    %v192 = vunpack.c.l.b16 %v108
    %v193 = vunpack.c.l.b16 %v109
    %v194 = vunpack.c.l.b16 %v110
    %v195 = vunpack.c.l.b16 %v111
    %v196 = vunpack.c.l.b16 %v112
    %v197 = vunpack.c.l.b16 %v113
    %v198 = vunpack.c.l.b16 %v114
    %v199 = vunpack.c.l.b16 %v115
    %v200 = vunpack.c.l.b16 %v116
    %v201 = vunpack.c.l.b16 %v117
    %v202 = vunpack.c.l.b16 %v118
    %v203 = vunpack.c.l.b16 %v119
    %v204 = vunpack.c.l.b16 %v120
    %v205 = vunpack.c.l.b16 %v121
    %v206 = vpack.c.b16 %v191, %v190
    %v207 = vpack.c.b16 %v193, %v192
    %v208 = vpack.c.b16 %v195, %v194
    %v209 = vpack.c.b16 %v197, %v196
    %v210 = vpack.c.b16 %v199, %v198
    %v211 = vpack.c.b16 %v201, %v200
    %v212 = vpack.c.b16 %v203, %v202
    %v213 = vpack.c.b16 %v205, %v204
    %222 = vmatpush.bf16.msra.mxu0 %v213
    %223 = vmatpush.bf16.msra.mxu0 %v212
    %224 = vmatpush.bf16.msra.mxu0 %v211
    %225 = vmatpush.bf16.msra.mxu0 %v210
    %226 = vmatpush.bf16.msra.mxu0 %v209
    %227 = vmatpush.bf16.msra.mxu0 %v208
    %228 = vmatpush.bf16.msra.mxu0 %v207
    %229 = vmatpush.bf16.msra.mxu0 %v206
    %230 = vmatmul.bf16.gmra.mxu0 %v158
    %v231 = vpop.f32.mrf.mxu0
    %v232 = vadd.f32 %v124, %v231
    %v233 = vpop.f32.mrf.mxu0
    %v234 = vadd.f32 %v124, %v233
    %235 = vmatmul.bf16.gmra.mxu0 %v159
    %v236 = vpop.f32.mrf.mxu0
    %v237 = vadd.f32 %v124, %v236
    %v238 = vpop.f32.mrf.mxu0
    %v239 = vadd.f32 %v124, %v238
    %240 = vmatmul.bf16.gmra.mxu0 %v160
    %v241 = vpop.f32.mrf.mxu0
    %v242 = vadd.f32 %v124, %v241
    %v243 = vpop.f32.mrf.mxu0
    %v244 = vadd.f32 %v124, %v243
    %245 = vmatmul.bf16.gmra.mxu0 %v161
    %v246 = vpop.f32.mrf.mxu0
    %v247 = vadd.f32 %v124, %v246
    %v248 = vpop.f32.mrf.mxu0
    %v249 = vadd.f32 %v124, %v248
    %250 = vmatmul.bf16.gmra.mxu0 %v162
    %v251 = vpop.f32.mrf.mxu0
    %v252 = vadd.f32 %v124, %v251
    %v253 = vpop.f32.mrf.mxu0
    %v254 = vadd.f32 %v124, %v253
    %255 = vmatmul.bf16.gmra.mxu0 %v163
    %v256 = vpop.f32.mrf.mxu0
    %v257 = vadd.f32 %v124, %v256
    %v258 = vpop.f32.mrf.mxu0
    %v259 = vadd.f32 %v124, %v258
    %260 = vmatmul.bf16.gmra.mxu0 %v164
    %v261 = vpop.f32.mrf.mxu0
    %v262 = vadd.f32 %v124, %v261
    %v263 = vpop.f32.mrf.mxu0
    %v264 = vadd.f32 %v124, %v263
    %265 = vmatmul.bf16.gmra.mxu0 %v165
    %v266 = vpop.f32.mrf.mxu0
    %v267 = vadd.f32 %v124, %v266
    %v268 = vpop.f32.mrf.mxu0
    %v269 = vadd.f32 %v124, %v268
    %270 = vdwg.mxu0
    %vm271 = vcmp.gt.f32.partialorder %v232, 0.0
    %vm272 = vcmp.gt.f32.partialorder %v234, 0.0
    %vm273 = vcmp.gt.f32.partialorder %v237, 0.0
    %vm274 = vcmp.gt.f32.partialorder %v239, 0.0
    %vm275 = vcmp.gt.f32.partialorder %v242, 0.0
    %vm276 = vcmp.gt.f32.partialorder %v244, 0.0
    %vm277 = vcmp.gt.f32.partialorder %v247, 0.0
    %vm278 = vcmp.gt.f32.partialorder %v249, 0.0
    %vm279 = vcmp.gt.f32.partialorder %v252, 0.0
    %vm280 = vcmp.gt.f32.partialorder %v254, 0.0
    %vm281 = vcmp.gt.f32.partialorder %v257, 0.0
    %vm282 = vcmp.gt.f32.partialorder %v259, 0.0
    %vm283 = vcmp.gt.f32.partialorder %v262, 0.0
    %vm284 = vcmp.gt.f32.partialorder %v264, 0.0
    %vm285 = vcmp.gt.f32.partialorder %v267, 0.0
    %vm286 = vcmp.gt.f32.partialorder %v269, 0.0
    %v287 = vmul.f32 %v232, 0.01
    %v288 = vmul.f32 %v234, 0.01
    %v289 = vmul.f32 %v237, 0.01
    %v290 = vmul.f32 %v239, 0.01
    %v291 = vmul.f32 %v242, 0.01
    %v292 = vmul.f32 %v244, 0.01
    %v293 = vmul.f32 %v247, 0.01
    %v294 = vmul.f32 %v249, 0.01
    %v295 = vmul.f32 %v252, 0.01
    %v296 = vmul.f32 %v254, 0.01
    %v297 = vmul.f32 %v257, 0.01
    %v298 = vmul.f32 %v259, 0.01
    %v299 = vmul.f32 %v262, 0.01
    %v300 = vmul.f32 %v264, 0.01
    %v301 = vmul.f32 %v267, 0.01
    %v302 = vmul.f32 %v269, 0.01
    %v303 = vsel %vm271, %v232, %v287
    %v304 = vsel %vm272, %v234, %v288
    %v305 = vsel %vm273, %v237, %v289
    %v306 = vsel %vm274, %v239, %v290
    %v307 = vsel %vm275, %v242, %v291
    %v308 = vsel %vm276, %v244, %v292
    %v309 = vsel %vm277, %v247, %v293
    %v310 = vsel %vm278, %v249, %v294
    %v311 = vsel %vm279, %v252, %v295
    %v312 = vsel %vm280, %v254, %v296
    %v313 = vsel %vm281, %v257, %v297
    %v314 = vsel %vm282, %v259, %v298
    %v315 = vsel %vm283, %v262, %v299
    %v316 = vsel %vm284, %v264, %v300
    %v317 = vsel %vm285, %v267, %v301
    %v318 = vsel %vm286, %v269, %v302
    %v319 = vpack.c.bf16 %v304, %v303
    %v320 = vpack.c.bf16 %v306, %v305
    %v321 = vpack.c.bf16 %v308, %v307
    %v322 = vpack.c.bf16 %v310, %v309
    %v323 = vpack.c.bf16 %v312, %v311
    %v324 = vpack.c.bf16 %v314, %v313
    %v325 = vpack.c.bf16 %v316, %v315
    %v326 = vpack.c.bf16 %v318, %v317
    %v327 = vld [vmem:[#allocation7] sm:$0xf]
    %v328 = vld [vmem:[#allocation7 + $0x4] sm:$0xf]
    %v329 = vld [vmem:[#allocation7 + $0x8] sm:$0xf]
    %v330 = vld [vmem:[#allocation7 + $0xc] sm:$0xf]
    %v331 = vld [vmem:[#allocation7 + $0x10] sm:$0xf]
    %v332 = vld [vmem:[#allocation7 + $0x14] sm:$0xf]
    %v333 = vld [vmem:[#allocation7 + $0x18] sm:$0xf]
    %v334 = vld [vmem:[#allocation7 + $0x1c] sm:$0xf]
    %v335 = vld [vmem:[#allocation7 + $0x20] sm:$0xf]
    %v336 = vld [vmem:[#allocation7 + $0x24] sm:$0xf]
    %v337 = vld [vmem:[#allocation7 + $0x28] sm:$0xf]
    %v338 = vld [vmem:[#allocation7 + $0x2c] sm:$0xf]
    %v339 = vld [vmem:[#allocation7 + $0x30] sm:$0xf]
    %v340 = vld [vmem:[#allocation7 + $0x34] sm:$0xf]
    %v341 = vld [vmem:[#allocation7 + $0x38] sm:$0xf]
    %v342 = vld [vmem:[#allocation7 + $0x3c] sm:$0xf]
    %v343 = vld [vmem:[%s4] sm:$0x1]
    %v345 = vperm.slane %v343, 0
    %v363 = vunpack.c.l.b16 %v327
    %v364 = vunpack.c.l.b16 %v328
    %v365 = vunpack.c.l.b16 %v329
    %v366 = vunpack.c.l.b16 %v330
    %v367 = vunpack.c.l.b16 %v331
    %v368 = vunpack.c.l.b16 %v332
    %v369 = vunpack.c.l.b16 %v333
    %v370 = vunpack.c.l.b16 %v334
    %v371 = vunpack.c.l.b16 %v335
    %v372 = vunpack.c.l.b16 %v336
    %v373 = vunpack.c.l.b16 %v337
    %v374 = vunpack.c.l.b16 %v338
    %v375 = vunpack.c.l.b16 %v339
    %v376 = vunpack.c.l.b16 %v340
    %v377 = vunpack.c.l.b16 %v341
    %v378 = vunpack.c.l.b16 %v342
    %v379 = vpack.c.b16 %v364, %v363
    %v380 = vpack.c.b16 %v366, %v365
    %v381 = vpack.c.b16 %v368, %v367
    %v382 = vpack.c.b16 %v370, %v369
    %v383 = vpack.c.b16 %v372, %v371
    %v384 = vpack.c.b16 %v374, %v373
    %v385 = vpack.c.b16 %v376, %v375
    %v386 = vpack.c.b16 %v378, %v377
    %395 = vmatpush.bf16.msra.mxu0 %v386
    %396 = vmatpush.bf16.msra.mxu0 %v385
    %397 = vmatpush.bf16.msra.mxu0 %v384
    %398 = vmatpush.bf16.msra.mxu0 %v383
    %399 = vmatpush.bf16.msra.mxu0 %v382
    %400 = vmatpush.bf16.msra.mxu0 %v381
    %401 = vmatpush.bf16.msra.mxu0 %v380
    %402 = vmatpush.bf16.msra.mxu0 %v379
    %403 = vmatmul.bf16.gmra.mxu0 %v319
    %v404 = vpop.f32.mrf.mxu0
    %v405 = vadd.f32 %v345, %v404
    %v406 = vpop.f32.mrf.mxu0
    %v407 = vadd.f32 %v345, %v406
    %408 = vmatmul.bf16.gmra.mxu0 %v320
    %v409 = vpop.f32.mrf.mxu0
    %v410 = vadd.f32 %v345, %v409
    %v411 = vpop.f32.mrf.mxu0
    %v412 = vadd.f32 %v345, %v411
    %413 = vmatmul.bf16.gmra.mxu0 %v321
    %v414 = vpop.f32.mrf.mxu0
    %v415 = vadd.f32 %v345, %v414
    %v416 = vpop.f32.mrf.mxu0
    %v417 = vadd.f32 %v345, %v416
    %418 = vmatmul.bf16.gmra.mxu0 %v322
    %v419 = vpop.f32.mrf.mxu0
    %v420 = vadd.f32 %v345, %v419
    %v421 = vpop.f32.mrf.mxu0
    %v422 = vadd.f32 %v345, %v421
    %423 = vmatmul.bf16.gmra.mxu0 %v323
    %v424 = vpop.f32.mrf.mxu0
    %v425 = vadd.f32 %v345, %v424
    %v426 = vpop.f32.mrf.mxu0
    %v427 = vadd.f32 %v345, %v426
    %428 = vmatmul.bf16.gmra.mxu0 %v324
    %v429 = vpop.f32.mrf.mxu0
    %v430 = vadd.f32 %v345, %v429
    %v431 = vpop.f32.mrf.mxu0
    %v432 = vadd.f32 %v345, %v431
    %433 = vmatmul.bf16.gmra.mxu0 %v325
    %v434 = vpop.f32.mrf.mxu0
    %v435 = vadd.f32 %v345, %v434
    %v436 = vpop.f32.mrf.mxu0
    %v437 = vadd.f32 %v345, %v436
    %438 = vmatmul.bf16.gmra.mxu0 %v326
    %v439 = vpop.f32.mrf.mxu0
    %v440 = vadd.f32 %v345, %v439
    %v441 = vpop.f32.mrf.mxu0
    %v442 = vadd.f32 %v345, %v441
    %443 = vdwg.mxu0
    %v444 = vld [vmem:[#allocation8] sm:$0xff]
    %v445 = vld [vmem:[#allocation8 + $0x8] sm:$0xff]
    %v446 = vld [vmem:[#allocation8 + $0x10] sm:$0xff]
    %v447 = vld [vmem:[#allocation8 + $0x18] sm:$0xff]
    %v448 = vunpack.c.0.s8 %v444
    %v449 = vunpack.c.1.s8 %v444
    %v450 = vunpack.c.2.s8 %v444
    %v451 = vunpack.c.3.s8 %v444
    %v452 = vunpack.c.0.s8 %v445
    %v453 = vunpack.c.1.s8 %v445
    %v454 = vunpack.c.2.s8 %v445
    %v455 = vunpack.c.3.s8 %v445
    %v456 = vunpack.c.0.s8 %v446
    %v457 = vunpack.c.1.s8 %v446
    %v458 = vunpack.c.2.s8 %v446
    %v459 = vunpack.c.3.s8 %v446
    %v460 = vunpack.c.0.s8 %v447
    %v461 = vunpack.c.1.s8 %v447
    %v462 = vunpack.c.2.s8 %v447
    %v463 = vunpack.c.3.s8 %v447
    %v464 = vcvt.s32.f32 %v448
    %v465 = vcvt.s32.f32 %v449
    %v466 = vcvt.s32.f32 %v450
    %v467 = vcvt.s32.f32 %v451
    %v468 = vcvt.s32.f32 %v452
    %v469 = vcvt.s32.f32 %v453
    %v470 = vcvt.s32.f32 %v454
    %v471 = vcvt.s32.f32 %v455
    %v472 = vcvt.s32.f32 %v456
    %v473 = vcvt.s32.f32 %v457
    %v474 = vcvt.s32.f32 %v458
    %v475 = vcvt.s32.f32 %v459
    %v476 = vcvt.s32.f32 %v460
    %v477 = vcvt.s32.f32 %v461
    %v478 = vcvt.s32.f32 %v462
    %v479 = vcvt.s32.f32 %v463
    %v480 = vpack.c.bf16 %v465, %v464
    %v481 = vpack.c.bf16 %v467, %v466
    %v482 = vpack.c.bf16 %v469, %v468
    %v483 = vpack.c.bf16 %v471, %v470
    %v484 = vpack.c.bf16 %v473, %v472
    %v485 = vpack.c.bf16 %v475, %v474
    %v486 = vpack.c.bf16 %v477, %v476
    %v487 = vpack.c.bf16 %v479, %v478
    %v488 = vpack.c.bf16 %v407, %v405
    %v489 = vpack.c.bf16 %v412, %v410
    %v490 = vpack.c.bf16 %v417, %v415
    %v491 = vpack.c.bf16 %v422, %v420
    %v492 = vpack.c.bf16 %v427, %v425
    %v493 = vpack.c.bf16 %v432, %v430
    %v494 = vpack.c.bf16 %v437, %v435
    %v495 = vpack.c.bf16 %v442, %v440
    %v496 = vld [vmem:[%s6] sm:$0x1]
    %v498 = vperm.slane %v496, 0
    %500 = vmatpush.bf16.msra.mxu0 %v495
    %501 = vmatpush.bf16.msra.mxu0 %v494
    %502 = vmatpush.bf16.msra.mxu0 %v493
    %503 = vmatpush.bf16.msra.mxu0 %v492
    %504 = vmatpush.bf16.msra.mxu0 %v491
    %505 = vmatpush.bf16.msra.mxu0 %v490
    %506 = vmatpush.bf16.msra.mxu0 %v489
    %507 = vmatpush.bf16.msra.mxu0 %v488
    %508 = vmatmul.bf16.gmra.mxu0 %v480
    %v509 = vpop.f32.mrf.mxu0
    %v510 = vadd.f32 %v498, %v509
    %v511 = vpop.f32.mrf.mxu0
    %v512 = vadd.f32 %v498, %v511
    %513 = vmatmul.bf16.gmra.mxu0 %v481
    %v514 = vpop.f32.mrf.mxu0
    %v515 = vadd.f32 %v498, %v514
    %v516 = vpop.f32.mrf.mxu0
    %v517 = vadd.f32 %v498, %v516
    %518 = vmatmul.bf16.gmra.mxu0 %v482
    %v519 = vpop.f32.mrf.mxu0
    %v520 = vadd.f32 %v498, %v519
    %v521 = vpop.f32.mrf.mxu0
    %v522 = vadd.f32 %v498, %v521
    %523 = vmatmul.bf16.gmra.mxu0 %v483
    %v524 = vpop.f32.mrf.mxu0
    %v525 = vadd.f32 %v498, %v524
    %v526 = vpop.f32.mrf.mxu0
    %v527 = vadd.f32 %v498, %v526
    %528 = vmatmul.bf16.gmra.mxu0 %v484
    %v529 = vpop.f32.mrf.mxu0
    %v530 = vadd.f32 %v498, %v529
    %v531 = vpop.f32.mrf.mxu0
    %v532 = vadd.f32 %v498, %v531
    %533 = vmatmul.bf16.gmra.mxu0 %v485
    %v534 = vpop.f32.mrf.mxu0
    %v535 = vadd.f32 %v498, %v534
    %v536 = vpop.f32.mrf.mxu0
    %v537 = vadd.f32 %v498, %v536
    %538 = vmatmul.bf16.gmra.mxu0 %v486
    %v539 = vpop.f32.mrf.mxu0
    %v540 = vadd.f32 %v498, %v539
    %v541 = vpop.f32.mrf.mxu0
    %v542 = vadd.f32 %v498, %v541
    %543 = vmatmul.bf16.gmra.mxu0 %v487
    %v544 = vpop.f32.mrf.mxu0
    %v545 = vadd.f32 %v498, %v544
    %v546 = vpop.f32.mrf.mxu0
    %v547 = vadd.f32 %v498, %v546
    %548 = vdwg.mxu0
    %549 = vst [vmem:[#allocation10] sm:$0xff] %v510
    %550 = vst [vmem:[#allocation10 + $0x8] sm:$0xff] %v512
    %551 = vst [vmem:[#allocation10 + $0x10] sm:$0xff] %v515
    %552 = vst [vmem:[#allocation10 + $0x18] sm:$0xff] %v517
    %553 = vst [vmem:[#allocation10 + $0x20] sm:$0xff] %v520
    %554 = vst [vmem:[#allocation10 + $0x28] sm:$0xff] %v522
    %555 = vst [vmem:[#allocation10 + $0x30] sm:$0xff] %v525
    %556 = vst [vmem:[#allocation10 + $0x38] sm:$0xff] %v527
    %557 = vst [vmem:[#allocation10 + $0x40] sm:$0xff] %v530
    %558 = vst [vmem:[#allocation10 + $0x48] sm:$0xff] %v532
    %559 = vst [vmem:[#allocation10 + $0x50] sm:$0xff] %v535
    %560 = vst [vmem:[#allocation10 + $0x58] sm:$0xff] %v537
    %561 = vst [vmem:[#allocation10 + $0x60] sm:$0xff] %v540
    %562 = vst [vmem:[#allocation10 + $0x68] sm:$0xff] %v542
    %563 = vst [vmem:[#allocation10 + $0x70] sm:$0xff] %v545
    %564 = vst [vmem:[#allocation10 + $0x78] sm:$0xff] %v547
    // Predicated region
    $region46: #{tpu_custom_call.1} parent=1 // pred_check
      _
    $region47: #{tpu_custom_call.1} parent=1 // pred_check_branch
      %566 = sbr.rel (0) target = $region49
    $region48: #{tpu_custom_call.1} parent=1 // pred_region
      %568 = vsyncadd [#allocation4], 0
      %s569 = sshll.u32 [#allocation10], 4
      %s570 = int_to_ptr.vmem [resolvable:$true] %s569
      %s571 = sshll.u32 %s7, 4
      %s572 = int_to_ptr.hbm [resolvable:$true] %s571
      %577 = dma.vmem_to_hbm [thread:$0]  %s570, 2048, %s572, [#allocation4], 128, 128, 8
    $region49: #{tpu_custom_call.1} parent=1 // pred_fallthru
      _
    // Predicated region
    $region50: #{tpu_custom_call.1} parent=1 // pred_check
      _
    $region51: #{tpu_custom_call.1} parent=1 // pred_check_branch
      %579 = sbr.rel (0) target = $region53
    $region52: #{tpu_custom_call.1} parent=1 // pred_region
      %581 = dma.done [#allocation4], 2048
    $region53: #{tpu_custom_call.1} parent=1 // pred_fallthru
      _
    %582 = vsyncpa [#allocation3], 1
    %583 = vsyncpa [#allocation6], 1
    %584 = vsyncpa [#allocation9], 1
    %585 = vsyncpa [#allocation4], 1

</llo_original>
